<compile_context>
chip_gen: v6e
topology: v6e:2x2x1
jax: 0.10.0
libtpu: 0.0.40
codegen_flags: <defaults>
</compile_context>

<pallas_src>
import math
from functools import partial

import jax
import jax.numpy as jnp
from jax import lax
from jax.experimental import pallas as pl
from jax.experimental.pallas import tpu as pltpu


def _round_up(x, m):
    return ((x + m - 1) // m) * m


def _vmem_limit_bytes():
    """Generation-aware VMEM budget (~half of physical, capped at 64 MiB)."""
    cap = 128 * 1024 * 1024
    try:
        info = pltpu.get_tpu_info()
        cap = int(getattr(info, "vmem_capacity_bytes", cap))
    except Exception:
        pass
    return int(min(cap // 2, 64 * 1024 * 1024))


# ----------------------------- kernels ------------------------------------ #

def _positive_linear_kernel_inplace(x_ref, w_ref, b_ref, o_ref):
    """f32 output: accumulate directly into the resident output block."""
    k = pl.program_id(2)

    @pl.when(k == 0)
    def _init():
        o_ref[...] = jnp.zeros_like(o_ref)

    o_ref[...] += jnp.dot(x_ref[...], w_ref[...],
                          preferred_element_type=jnp.float32)

    @pl.when(k == pl.num_programs(2) - 1)
    def _finalize():
        o_ref[...] += b_ref[...].astype(o_ref.dtype)


def _positive_linear_kernel_scratch(x_ref, w_ref, b_ref, o_ref, acc_ref):
    """Non-f32 output: f32 VMEM accumulator, cast once at the end."""
    k = pl.program_id(2)

    @pl.when(k == 0)
    def _init():
        acc_ref[...] = jnp.zeros_like(acc_ref)

    acc_ref[...] += jnp.dot(x_ref[...], w_ref[...],
                            preferred_element_type=jnp.float32)

    @pl.when(k == pl.num_programs(2) - 1)
    def _finalize():
        o_ref[...] = (acc_ref[...] + b_ref[...]).astype(o_ref.dtype)


# ----------------------------- wrapper ------------------------------------ #

@partial(jax.jit, static_argnames=("tm", "tn", "tk", "compute_dtype"))
def positive_linear(x, weight, bias=None, *,
                    tm=512, tn=512, tk=512, compute_dtype=jnp.bfloat16):
    """x: (..., in_features); weight: (out, in) [nn.Linear layout]; bias: (out,)."""
    out_features, in_features = weight.shape
    lead = x.shape[:-1]
    m = math.prod(lead) if lead else 1
    out_dtype = x.dtype
    cdt = jnp.float32 if compute_dtype is None else compute_dtype

    x2d = x.reshape(m, in_features)
    if bias is None:
        bias = jnp.zeros((out_features,), dtype=jnp.float32)

    # Clamp tile sizes to the (8, 128)-aligned padded problem dims.
    tm = min(tm, _round_up(m, 8))
    tn = min(tn, _round_up(out_features, 128))
    tk = min(tk, _round_up(in_features, 128))

    mp = _round_up(m, tm)
    np_ = _round_up(out_features, tn)
    kp = _round_up(in_features, tk)

    # v7x has 2 TensorCores; keep the parallel (i, j) grid >= 2 when possible.
    if (mp // tm) * (np_ // tn) == 1:
        if np_ >= 256 and (np_ // 2) % 128 == 0:
            tn = np_ // 2
        elif mp >= 16 and (mp // 2) % 8 == 0:
            tm = mp // 2

    # x: cast to compute dtype before the pallas_call (halves HBM bytes for
    # bf16), then zero-pad only if needed.
    x_p = x2d.astype(cdt)
    if (mp, kp) != (m, in_features):
        x_p = jnp.pad(x_p, ((0, mp - m), (0, kp - in_features)))

    # W: one fused pass -> transpose to (K, N), exp, cast, pad.  Padding the
    # *exponentiated* weight with zeros is exact: padded K rows multiply the
    # zero-padded x columns and padded N columns are sliced away.
    w_p = jnp.exp(weight.astype(jnp.float32).T).astype(cdt)
    if (kp, np_) != (in_features, out_features):
        w_p = jnp.pad(w_p, ((0, kp - in_features), (0, np_ - out_features)))

    b_p = bias.astype(jnp.float32).reshape(1, out_features)
    if np_ != out_features:
        b_p = jnp.pad(b_p, ((0, 0), (0, np_ - out_features)))

    grid = (mp // tm, np_ // tn, kp // tk)

    out_is_f32 = jnp.dtype(out_dtype) == jnp.dtype(jnp.float32)
    if out_is_f32:
        kernel = _positive_linear_kernel_inplace
        scratch_shapes = []
    else:
        kernel = _positive_linear_kernel_scratch
        scratch_shapes = [pltpu.VMEM((tm, tn), jnp.float32)]

    cost = pl.CostEstimate(
        flops=2 * mp * np_ * kp,
        transcendentals=0,  # exp(W) precomputed in the wrapper
        bytes_accessed=int(
            x_p.size * x_p.dtype.itemsize * grid[1]        # x re-read per j
            + w_p.size * w_p.dtype.itemsize * grid[0]      # W re-read per i
            + b_p.size * b_p.dtype.itemsize * grid[0]
            + mp * np_ * jnp.dtype(out_dtype).itemsize),
    )

    out_p = pl.pallas_call(
        kernel,
        out_shape=jax.ShapeDtypeStruct((mp, np_), out_dtype),
        grid=grid,
        in_specs=[
            pl.BlockSpec((tm, tk), lambda i, j, k: (i, k)),   # x tile
            pl.BlockSpec((tk, tn), lambda i, j, k: (k, j)),   # exp(W)^T tile
            pl.BlockSpec((1, tn), lambda i, j, k: (0, j)),    # bias tile
        ],
        out_specs=pl.BlockSpec((tm, tn), lambda i, j, k: (i, j)),
        scratch_shapes=scratch_shapes,
        compiler_params=pltpu.CompilerParams(
            dimension_semantics=("parallel", "parallel", "arbitrary"),
            vmem_limit_bytes=_vmem_limit_bytes(),
        ),
        cost_estimate=cost,
    )(x_p, w_p, b_p)

    out2d = out_p[:m, :out_features]
    return out2d.reshape(*lead, out_features)


# -------------------------- init & reference ------------------------------ #

def init_positive_linear_params(key, in_features, out_features, dtype=jnp.float32):
    """Mimics PyTorch kaiming_uniform_(a=sqrt(5)) + uniform bias:
    both ~ U(-1/sqrt(fan_in), 1/sqrt(fan_in))."""
    kw, kb = jax.random.split(key)
    bound = 1.0 / math.sqrt(in_features)
    weight = jax.random.uniform(
        kw, (out_features, in_features), dtype=dtype, minval=-bound, maxval=bound)
    bias = jax.random.uniform(
        kb, (out_features,), dtype=dtype, minval=-bound, maxval=bound)
    return weight, bias


def _reference(x, weight, bias, compute_dtype=None):
    """Pure-JAX reference. compute_dtype mirrors the kernel's operand cast."""
    pw = jnp.exp(weight.astype(jnp.float32))
    xc = x
    if compute_dtype is not None:
        pw = pw.astype(compute_dtype)
        xc = x.astype(compute_dtype)
    y = jnp.einsum("...k,nk->...n", xc, pw,
                   preferred_element_type=jnp.float32,
                   precision=lax.Precision.HIGHEST)
    return y + bias.astype(jnp.float32)


# -------------------------------- main ------------------------------------ #

if __name__ == "__main__":
    key = jax.random.PRNGKey(0)
    k_x, k_p, k_x2, k_p2 = jax.random.split(key, 4)

    # Small shape consistent with the module usage.
    batch, seq, in_f, out_f = 2, 8, 32, 32
    x = jax.random.normal(k_x, (batch, seq, in_f), dtype=jnp.float32)
    weight, bias = init_positive_linear_params(k_p, in_f, out_f)

    # Default path: bf16 operands, f32 accumulation (in-place f32 output).
    out_bf = jax.block_until_ready(positive_linear(x, weight, bias))
    ref_match = _reference(x, weight, bias, compute_dtype=jnp.bfloat16)
    ref_f32 = _reference(x, weight, bias)
    assert out_bf.shape == (batch, seq, out_f)
    assert jnp.allclose(out_bf, ref_match, atol=1e-2, rtol=1e-2), "bf16 path mismatch"
    # Loose sanity check vs full-f32 reference (bf16 operand rounding, K=32).
    assert jnp.allclose(out_bf, ref_f32, atol=1e-1, rtol=5e-2), "bf16 vs f32 sanity"

    # Full-f32 operand path.
    out_f32 = jax.block_until_ready(positive_linear(x, weight, bias, compute_dtype=None))
    assert jnp.allclose(out_f32, ref_f32, atol=5e-3, rtol=5e-3), "f32 path mismatch"

    # Multi-tile accumulating grid (explicit small tiles exercise the K sweep,
    # padding of M/N/K, and the parallel i/j axes).
    b2, s2, k2, n2 = 2, 192, 384, 320
    x2 = jax.random.normal(k_x2, (b2, s2, k2), dtype=jnp.float32)
    w2, bias2 = init_positive_linear_params(k_p2, k2, n2)
    out2 = jax.block_until_ready(
        positive_linear(x2, w2, bias2, tm=128, tn=128, tk=128))
    ref2 = _reference(x2, w2, bias2, compute_dtype=jnp.bfloat16)
    assert out2.shape == (b2, s2, n2)
    assert jnp.allclose(out2, ref2, atol=2e-2, rtol=2e-2), "tiled-shape mismatch"

    # bf16 input/output exercises the scratch-accumulator kernel variant.
    x_bf16 = x.astype(jnp.bfloat16)
    out3 = jax.block_until_ready(positive_linear(x_bf16, weight, bias))
    ref3 = _reference(x_bf16, weight, bias, compute_dtype=jnp.bfloat16)
    assert out3.dtype == jnp.bfloat16
    assert jnp.allclose(out3.astype(jnp.float32), ref3, atol=2e-2, rtol=2e-2), \
        "bf16-output mismatch"

    print("KERNEL_OK")
</pallas_src>

<mosaic_0001>
module attributes {stable_mosaic.version = 11 : i64} {
  func.func @_positive_linear_kernel_inplace(%arg0: i32, %arg1: i32, %arg2: i32, %arg3: memref<8x128xbf16, #tpu.memory_space<vmem>>, %arg4: memref<128x128xbf16, #tpu.memory_space<vmem>>, %arg5: memref<1x128xf32, #tpu.memory_space<vmem>>, %arg6: memref<8x128xf32, #tpu.memory_space<vmem>>) attributes {dimension_semantics = [#tpu.dimension_semantics<parallel>, #tpu.dimension_semantics<parallel>, #tpu.dimension_semantics<arbitrary>], iteration_bounds = array<i64: 2, 1, 1>, scalar_prefetch = 0 : i64, scratch_operands = 0 : i64, tpu.core_type = #tpu.core_type<tc>, window_params = [{transform_indices = @transform_0, window_bounds = array<i64: 8, 128>}, {transform_indices = @transform_1, window_bounds = array<i64: 128, 128>}, {transform_indices = @transform_2, window_bounds = array<i64: 1, 128>}, {transform_indices = @transform_3, window_bounds = array<i64: 8, 128>}]} {
    %c0_i32 = arith.constant 0 : i32
    %0 = arith.cmpi eq, %arg2, %c0_i32 : i32
    %1 = arith.extui %0 : i1 to i32
    %c0_i32_0 = arith.constant 0 : i32
    %2 = arith.cmpi ne, %1, %c0_i32_0 : i32
    scf.if %2 {
      %cst_10 = arith.constant 0.000000e+00 : f32
      %12 = vector.broadcast %cst_10 : f32 to vector<8x128xf32>
      %c0_11 = arith.constant 0 : index
      %c0_12 = arith.constant 0 : index
      %13 = vector.load %arg6[%c0_11, %c0_12] : memref<8x128xf32, #tpu.memory_space<vmem>>, vector<8x128xf32>
      tpu.vector_store %arg6[%c0_11, %c0_12], %12 {strides = array<i32>} : memref<8x128xf32, #tpu.memory_space<vmem>>, vector<8x128xf32>,
    } else {
    }
    %c0 = arith.constant 0 : index
    %c0_1 = arith.constant 0 : index
    %3 = vector.load %arg6[%c0, %c0_1] : memref<8x128xf32, #tpu.memory_space<vmem>>, vector<8x128xf32>
    %c0_2 = arith.constant 0 : index
    %c0_3 = arith.constant 0 : index
    %4 = vector.load %arg3[%c0_2, %c0_3] : memref<8x128xbf16, #tpu.memory_space<vmem>>, vector<8x128xbf16>
    %c0_4 = arith.constant 0 : index
    %c0_5 = arith.constant 0 : index
    %5 = vector.load %arg4[%c0_4, %c0_5] : memref<128x128xbf16, #tpu.memory_space<vmem>>, vector<128x128xbf16>
    %cst = arith.constant dense<0.000000e+00> : vector<8x128xf32>
    %6 = tpu.matmul %4, %5, %cst {dimension_numbers = #tpu.dot_dimension_numbers<[1], [0], [0], [1], [0, 0, 1, 1], [], []>} : vector<8x128xbf16>, vector<128x128xbf16>, vector<8x128xf32> -> vector<8x128xf32>
    %7 = arith.addf %3, %6 : vector<8x128xf32>
    %c0_6 = arith.constant 0 : index
    %c0_7 = arith.constant 0 : index
    %8 = vector.load %arg6[%c0_6, %c0_7] : memref<8x128xf32, #tpu.memory_space<vmem>>, vector<8x128xf32>
    tpu.vector_store %arg6[%c0_6, %c0_7], %7 {strides = array<i32>} : memref<8x128xf32, #tpu.memory_space<vmem>>, vector<8x128xf32>,
    %c0_i32_8 = arith.constant 0 : i32
    %9 = arith.cmpi eq, %arg2, %c0_i32_8 : i32
    %10 = arith.extui %9 : i1 to i32
    %c0_i32_9 = arith.constant 0 : i32
    %11 = arith.cmpi ne, %10, %c0_i32_9 : i32
    scf.if %11 {
      %c0_10 = arith.constant 0 : index
      %c0_11 = arith.constant 0 : index
      %12 = vector.load %arg6[%c0_10, %c0_11] : memref<8x128xf32, #tpu.memory_space<vmem>>, vector<8x128xf32>
      %c0_12 = arith.constant 0 : index
      %c0_13 = arith.constant 0 : index
      %13 = vector.load %arg5[%c0_12, %c0_13] : memref<1x128xf32, #tpu.memory_space<vmem>>, vector<1x128xf32>
      %14 = vector.broadcast %13 : vector<1x128xf32> to vector<8x128xf32>
      %15 = arith.addf %12, %14 : vector<8x128xf32>
      %c0_14 = arith.constant 0 : index
      %c0_15 = arith.constant 0 : index
      %16 = vector.load %arg6[%c0_14, %c0_15] : memref<8x128xf32, #tpu.memory_space<vmem>>, vector<8x128xf32>
      tpu.vector_store %arg6[%c0_14, %c0_15], %15 {strides = array<i32>} : memref<8x128xf32, #tpu.memory_space<vmem>>, vector<8x128xf32>,
    } else {
    }
    return
  }
  func.func @transform_0(%arg0: i32, %arg1: i32, %arg2: i32) -> (i32, i32) {
    %c0_i32 = arith.constant 0 : i32
    return %arg0, %arg2 : i32, i32
  }
  func.func @transform_1(%arg0: i32, %arg1: i32, %arg2: i32) -> (i32, i32) {
    %c0_i32 = arith.constant 0 : i32
    return %arg2, %arg1 : i32, i32
  }
  func.func @transform_2(%arg0: i32, %arg1: i32, %arg2: i32) -> (i32, i32) {
    %c0_i32 = arith.constant 0 : i32
    %c0_i32_0 = arith.constant 0 : i32
    return %c0_i32, %arg1 : i32, i32
  }
  func.func @transform_3(%arg0: i32, %arg1: i32, %arg2: i32) -> (i32, i32) {
    %c0_i32 = arith.constant 0 : i32
    return %arg0, %arg1 : i32, i32
  }
}

</mosaic_0001>

<llo_original>
// kernel: positive_linear.1
$region0: #{positive_linear.1}
  #allocation0 [shape = 'u32[]', space=smem, size = 0x4, offset = 0x4, fixed_abs, tag = 'smem constant byte address 0x4 - core index']
  #allocation1 [shape = 'u32[144,128]{1,0:T(1,128)}', space=vmem, size = 0x12000, scoped, tag = 'internal scratch']
  %s0 = inlined_call_operand.vmem [shape: bf16[16,128], index: 0, kind: input, shape index: {}]
  %s1 = inlined_call_operand.vmem [shape: bf16[128,128], index: 1, kind: input, shape index: {}]
  %s2 = inlined_call_operand.vmem [shape: f32[1,128], index: 2, kind: input, shape index: {}]
  %s3 = inlined_call_operand.vmem [shape: f32[16,128], index: 3, kind: output, shape index: {}]
  %s4 = sld [smem:[#allocation0]]
  $region53: #{positive_linear.1} parent=0
    _
  %s6 = ssub.s32 1, %s4
  %s7 = scalar_select 0, %s6, %s4
  loop: start=0, step=1, limit=4
  $region2: #{positive_linear.1} parent=0 // loop_pre_header
    _
  $region3: #{positive_linear.1} parent=0 // loop_header
    %s9 = sphi 0, %s13
    %p10 = scmp.ge.s32.totalorder %s9, 4
    %s16 = sphi 0, %s35
    %s17 = sphi 0, %s31
    %s18 = sphi 0, %s27
    %s19 = sphi 0, %s16
    %s20 = sphi 0, %s17
    %s21 = sphi 0, %s18
    %s22 = sphi 0, %s19
    %s23 = sphi 0, %s20
    %s24 = sphi 0, %s21
    %s40 = sphi 0, %s42
    %s43 = sphi 0, %s40
    %s44 = sphi 0, %s43
    %s60 = sphi 0, %s44
    %s68 = sphi 0, %s70
    %s71 = sphi 0, %s68
    %s72 = sphi 0, %s71
    %s88 = sphi 0, %s72
    %s94 = sphi 0, %s96
    %s97 = sphi 0, %s94
    %s98 = sphi 0, %s97
    %s114 = sphi 0, %s98
    %s122 = sphi 0, %s124
    %s125 = sphi 0, %s122
    %s126 = sphi 0, %s125
    %s142 = sphi 0, %s126
  $region4: #{positive_linear.1} parent=0 // loop_header_branch
    %12 = sbr.rel (%p10) target = $region8
  $region5: #{positive_linear.1} parent=0 // loop_body
    %s14 = ssub.s32 %s9, 1
    %s15 = ssub.s32 %s9, 2
    %s25 = sadd.s32 1, %s18
    %p26 = scmp.ge.s32.totalorder %s25, 1
    %s27 = scalar_select %p26, 0, %s25
    %s28 = sadd.s32 1, %s17
    %s29 = scalar_select %p26, %s28, %s17
    %p30 = scmp.ge.s32.totalorder %s29, 1
    %s31 = scalar_select %p30, 0, %s29
    %s32 = sadd.s32 1, %s16
    %s33 = scalar_select %p30, %s32, %s16
    %p34 = scmp.ge.s32.totalorder %s33, 2
    %s35 = scalar_select %p34, 0, %s33
    %s36 = ssub.s32 %s16, %s35
    %s37 = ssub.s32 %s18, %s27
    %s38 = sor.u32 %s36, %s37
    %p39 = scmp.eq.s32.totalorder %s38, 0
    %s41 = sadd.s32 %s40, 1
    %s42 = scalar_select %p39, %s40, %s41
    %p45 = pneg %p39
    %p46 = scmp.eq.s32.totalorder %s9, 1
    %p47 = por %p45, %p46
    %p48 = scmp.ne.s32.totalorder %s40, %s43
    %p49 = scmp.eq.s32.totalorder %s9, 0
    %p50 = por %p48, %p49
    %p51 = scmp.ne.s32.totalorder %s40, %s43
    %p52 = scmp.eq.s32.totalorder %s14, 1
    %p53 = por %p51, %p52
    %p54 = scmp.ne.s32.totalorder %s43, %s44
    %p55 = scmp.eq.s32.totalorder %s14, 0
    %p56 = por %p54, %p55
    %p57 = scmp.ne.s32.totalorder %s43, %s44
    %p58 = scmp.eq.s32.totalorder %s15, 1
    %p59 = por %p57, %p58
    %p61 = scmp.ne.s32.totalorder %s44, %s60
    %p62 = scmp.eq.s32.totalorder %s15, 0
    %p63 = por %p61, %p62
    %s64 = ssub.s32 %s18, %s27
    %s65 = ssub.s32 %s17, %s31
    %s66 = sor.u32 %s64, %s65
    %p67 = scmp.eq.s32.totalorder %s66, 0
    %s69 = sadd.s32 %s68, 1
    %s70 = scalar_select %p67, %s68, %s69
    %p73 = pneg %p67
    %p74 = scmp.eq.s32.totalorder %s9, 1
    %p75 = por %p73, %p74
    %p76 = scmp.ne.s32.totalorder %s68, %s71
    %p77 = scmp.eq.s32.totalorder %s9, 0
    %p78 = por %p76, %p77
    %p79 = scmp.ne.s32.totalorder %s68, %s71
    %p80 = scmp.eq.s32.totalorder %s14, 1
    %p81 = por %p79, %p80
    %p82 = scmp.ne.s32.totalorder %s71, %s72
    %p83 = scmp.eq.s32.totalorder %s14, 0
    %p84 = por %p82, %p83
    %p85 = scmp.ne.s32.totalorder %s71, %s72
    %p86 = scmp.eq.s32.totalorder %s15, 1
    %p87 = por %p85, %p86
    %p89 = scmp.ne.s32.totalorder %s72, %s88
    %p90 = scmp.eq.s32.totalorder %s15, 0
    %p91 = por %p89, %p90
    %s92 = ssub.s32 %s17, %s31
    %p93 = scmp.eq.s32.totalorder %s92, 0
    %s95 = sadd.s32 %s94, 1
    %s96 = scalar_select %p93, %s94, %s95
    %p99 = pneg %p93
    %p100 = scmp.eq.s32.totalorder %s9, 1
    %p101 = por %p99, %p100
    %p102 = scmp.ne.s32.totalorder %s94, %s97
    %p103 = scmp.eq.s32.totalorder %s9, 0
    %p104 = por %p102, %p103
    %p105 = scmp.ne.s32.totalorder %s94, %s97
    %p106 = scmp.eq.s32.totalorder %s14, 1
    %p107 = por %p105, %p106
    %p108 = scmp.ne.s32.totalorder %s97, %s98
    %p109 = scmp.eq.s32.totalorder %s14, 0
    %p110 = por %p108, %p109
    %p111 = scmp.ne.s32.totalorder %s97, %s98
    %p112 = scmp.eq.s32.totalorder %s15, 1
    %p113 = por %p111, %p112
    %p115 = scmp.ne.s32.totalorder %s98, %s114
    %p116 = scmp.eq.s32.totalorder %s15, 0
    %p117 = por %p115, %p116
    %s118 = ssub.s32 %s16, %s35
    %s119 = ssub.s32 %s17, %s31
    %s120 = sor.u32 %s118, %s119
    %p121 = scmp.eq.s32.totalorder %s120, 0
    %s123 = sadd.s32 %s122, 1
    %s124 = scalar_select %p121, %s122, %s123
    %p127 = pneg %p121
    %p128 = scmp.eq.s32.totalorder %s9, 1
    %p129 = por %p127, %p128
    %p130 = scmp.ne.s32.totalorder %s122, %s125
    %p131 = scmp.eq.s32.totalorder %s9, 0
    %p132 = por %p130, %p131
    %p133 = scmp.ne.s32.totalorder %s122, %s125
    %p134 = scmp.eq.s32.totalorder %s14, 1
    %p135 = por %p133, %p134
    %p136 = scmp.ne.s32.totalorder %s125, %s126
    %p137 = scmp.eq.s32.totalorder %s14, 0
    %p138 = por %p136, %p137
    %p139 = scmp.ne.s32.totalorder %s125, %s126
    %p140 = scmp.eq.s32.totalorder %s15, 1
    %p141 = por %p139, %p140
    %p143 = scmp.ne.s32.totalorder %s126, %s142
    %p144 = scmp.eq.s32.totalorder %s15, 0
    %p145 = por %p143, %p144
    %p146 = scmp.le.s32.totalorder 1, %s9
    %p147 = scmp.lt.s32.totalorder %s9, 3
    %p148 = pnand %p146, %p147
    %p149 = pneg %p148
    // Predicated region
    $region9: #{positive_linear.1} parent=5 // pred_check
      _
    $region10: #{positive_linear.1} parent=5 // pred_check_branch
      %151 = sbr.rel (%p148) target = $region12
    $region11: #{positive_linear.1} parent=5 // pred_region
      %s152 = ssub.s32 %s9, 1
      // Predicated region
      $region13: #{positive_linear.1} parent=11 // pred_check
        %p153 = pneg %p84
      $region14: #{positive_linear.1} parent=11 // pred_check_branch
        %155 = sbr.rel (%p153) target = $region16
      $region15: #{positive_linear.1} parent=11 // pred_region
        %s156 = smul.u32 16, %s21
        %p157 = scmp.lt.s32.totalorder %s156, 15
        %s158 = scalar_select %p157, %s156, 15
        %p159 = scmp.lt.s32.totalorder %s20, 0
        %s160 = scalar_select %p159, %s20, 0
        %s161 = sadd.s32 %s160, %s158
        %s162 = smul.addr %s161, 4
        %s163 = scalar_lea.vmem %s1, %s162
        %s164 = smul.u32 16, %s21
      $region16: #{positive_linear.1} parent=11 // pred_fallthru
        _
      // Predicated region
      $region17: #{positive_linear.1} parent=11 // pred_check
        %p165 = pneg %p110
      $region18: #{positive_linear.1} parent=11 // pred_check_branch
        %167 = sbr.rel (%p165) target = $region20
      $region19: #{positive_linear.1} parent=11 // pred_region
        %p168 = scmp.lt.s32.totalorder %s20, 0
        %s169 = scalar_select %p168, %s20, 0
        %s170 = scalar_lea.vmem %s2, %s169
      $region20: #{positive_linear.1} parent=11 // pred_fallthru
        _
    $region12: #{positive_linear.1} parent=5 // pred_fallthru
      _
    %p171 = scmp.lt.s32.totalorder %s9, 2
    // Predicated region
    $region21: #{positive_linear.1} parent=5 // pred_check
      %p172 = pneg %p171
    $region22: #{positive_linear.1} parent=5 // pred_check_branch
      %174 = sbr.rel (%p172) target = $region24
    $region23: #{positive_linear.1} parent=5 // pred_region
      // Predicated region
      $region25: #{positive_linear.1} parent=23 // pred_check
        %p175 = pneg %p50
      $region26: #{positive_linear.1} parent=23 // pred_check_branch
        %177 = sbr.rel (%p175) target = $region28
      $region27: #{positive_linear.1} parent=23 // pred_region
        %p178 = scmp.lt.s32.totalorder %s16, 1
        %s179 = scalar_select %p178, %s16, 1
        %p180 = scmp.lt.s32.totalorder %s18, 0
        %s181 = scalar_select %p180, %s18, 0
        %s182 = sadd.s32 %s181, %s179
        %s183 = smul.addr %s182, 4
        %s184 = scalar_lea.vmem %s0, %s183
      $region28: #{positive_linear.1} parent=23 // pred_fallthru
        _
    $region24: #{positive_linear.1} parent=5 // pred_fallthru
      _
    %p185 = scmp.le.s32.totalorder 1, %s9
    %p186 = scmp.lt.s32.totalorder %s9, 3
    %p187 = pnand %p185, %p186
    %p188 = pneg %p187
    // Predicated region
    $region29: #{positive_linear.1} parent=5 // pred_check
      _
    $region30: #{positive_linear.1} parent=5 // pred_check_branch
      %190 = sbr.rel (%p187) target = $region32
    $region31: #{positive_linear.1} parent=5 // pred_region
      %s191 = ssub.s32 %s9, 1
      %p192 = scmp.lt.s32.totalorder %s19, 1
      %s193 = scalar_select %p192, %s19, 1
      %p194 = scmp.lt.s32.totalorder %s21, 0
      %s195 = scalar_select %p194, %s21, 0
      %s196 = sadd.s32 %s195, %s193
      %s197 = smul.addr %s196, 4
      %s198 = scalar_lea.vmem %s0, %s197
      %p199 = pneg %p56
      %p200 = pneg %p53
      %s201 = smul.u32 16, %s21
      %p202 = scmp.lt.s32.totalorder %s201, 15
      %s203 = scalar_select %p202, %s201, 15
      %p204 = scmp.lt.s32.totalorder %s20, 0
      %s205 = scalar_select %p204, %s20, 0
      %s206 = sadd.s32 %s205, %s203
      %s207 = smul.addr %s206, 4
      %s208 = scalar_lea.vmem %s1, %s207
      %p209 = pneg %p84
      %p210 = pneg %p81
      %p211 = scmp.lt.s32.totalorder %s20, 0
      %s212 = scalar_select %p211, %s20, 0
      %s213 = scalar_lea.vmem %s2, %s212
      %p214 = pneg %p110
      %p215 = pneg %p107
      %p216 = pneg %p138
      %p217 = pneg %p135
      %p218 = scmp.lt.s32.totalorder %s19, 1
      %s219 = scalar_select %p218, %s19, 1
      %p220 = scmp.lt.s32.totalorder %s20, 0
      %s221 = scalar_select %p220, %s20, 0
      %s222 = sadd.s32 %s221, %s219
      %s223 = smul.addr %s222, 8
      %s224 = scalar_lea.vmem %s3, %s223
      %p225 = scmp.lt.s32.totalorder %s19, 1
      %s226 = scalar_select %p225, %s19, 1
      %p227 = scmp.lt.s32.totalorder %s21, 0
      %s228 = scalar_select %p227, %s21, 0
      %s229 = sadd.s32 %s228, %s226
      %s230 = smul.addr %s229, 4
      %s231 = scalar_lea.vmem %s0, %s230
      %s232 = smul.u32 16, %s21
      %p233 = scmp.lt.s32.totalorder %s232, 15
      %s234 = scalar_select %p233, %s232, 15
      %p235 = scmp.lt.s32.totalorder %s20, 0
      %s236 = scalar_select %p235, %s20, 0
      %s237 = sadd.s32 %s236, %s234
      %s238 = smul.addr %s237, 4
      %s239 = scalar_lea.vmem %s1, %s238
      %s240 = smul.u32 16, %s21
      %p241 = scmp.lt.s32.totalorder %s20, 0
      %s242 = scalar_select %p241, %s20, 0
      %s243 = scalar_lea.vmem %s2, %s242
      %p244 = scmp.lt.s32.totalorder %s19, 1
      %s245 = scalar_select %p244, %s19, 1
      %p246 = scmp.lt.s32.totalorder %s20, 0
      %s247 = scalar_select %p246, %s20, 0
      %s248 = sadd.s32 %s247, %s245
      %s249 = smul.addr %s248, 8
      %s250 = scalar_lea.vmem %s3, %s249
      %p252 = scmp.eq.s32.totalorder %s21, 0
      // Predicated region
      $region33: #{positive_linear.1} parent=31 // pred_check
        %p253 = pneg %p252
      $region34: #{positive_linear.1} parent=31 // pred_check_branch
        %255 = sbr.rel (%p253) target = $region36
      $region35: #{positive_linear.1} parent=31 // pred_region
        %256 = vst [vmem:[%s250] sm:$0xff] 0.0
      $region36: #{positive_linear.1} parent=31 // pred_fallthru
        _
      %v257 = vld [vmem:[%s250] sm:$0xff]
      %v258 = vld [vmem:[%s231] sm:$0xf]
      %v259 = vld [vmem:[%s239] sm:$0xf]
      %v260 = vld [vmem:[%s239 + $0x4] sm:$0xf]
      %v261 = vld [vmem:[%s239 + $0x8] sm:$0xf]
      %v262 = vld [vmem:[%s239 + $0xc] sm:$0xf]
      %v263 = vld [vmem:[%s239 + $0x10] sm:$0xf]
      %v264 = vld [vmem:[%s239 + $0x14] sm:$0xf]
      %v265 = vld [vmem:[%s239 + $0x18] sm:$0xf]
      %v266 = vld [vmem:[%s239 + $0x1c] sm:$0xf]
      %v267 = vld [vmem:[%s239 + $0x20] sm:$0xf]
      %v268 = vld [vmem:[%s239 + $0x24] sm:$0xf]
      %v269 = vld [vmem:[%s239 + $0x28] sm:$0xf]
      %v270 = vld [vmem:[%s239 + $0x2c] sm:$0xf]
      %v271 = vld [vmem:[%s239 + $0x30] sm:$0xf]
      %v272 = vld [vmem:[%s239 + $0x34] sm:$0xf]
      %v273 = vld [vmem:[%s239 + $0x38] sm:$0xf]
      %v274 = vld [vmem:[%s239 + $0x3c] sm:$0xf]
      %v291 = vunpack.c.l.b16 %v259
      %v292 = vunpack.c.l.b16 %v260
      %v293 = vunpack.c.l.b16 %v261
      %v294 = vunpack.c.l.b16 %v262
      %v295 = vunpack.c.l.b16 %v263
      %v296 = vunpack.c.l.b16 %v264
      %v297 = vunpack.c.l.b16 %v265
      %v298 = vunpack.c.l.b16 %v266
      %v299 = vunpack.c.l.b16 %v267
      %v300 = vunpack.c.l.b16 %v268
      %v301 = vunpack.c.l.b16 %v269
      %v302 = vunpack.c.l.b16 %v270
      %v303 = vunpack.c.l.b16 %v271
      %v304 = vunpack.c.l.b16 %v272
      %v305 = vunpack.c.l.b16 %v273
      %v306 = vunpack.c.l.b16 %v274
      %v307 = vpack.c.b16 %v292, %v291
      %v308 = vpack.c.b16 %v294, %v293
      %v309 = vpack.c.b16 %v296, %v295
      %v310 = vpack.c.b16 %v298, %v297
      %v311 = vpack.c.b16 %v300, %v299
      %v312 = vpack.c.b16 %v302, %v301
      %v313 = vpack.c.b16 %v304, %v303
      %v314 = vpack.c.b16 %v306, %v305
      %323 = vmatprep.subr.bf16.mxu0 0
      %324 = vmatpush1.bf16.msra.mxu0 %v314
      %325 = vmatprep.subr.bf16.mxu0 0
      %326 = vmatpush1.bf16.msra.mxu0 %v313
      %327 = vmatprep.subr.bf16.mxu0 0
      %328 = vmatpush1.bf16.msra.mxu0 %v312
      %329 = vmatprep.subr.bf16.mxu0 0
      %330 = vmatpush1.bf16.msra.mxu0 %v311
      %331 = vmatprep.subr.bf16.mxu0 0
      %332 = vmatpush1.bf16.msra.mxu0 %v310
      %333 = vmatprep.subr.bf16.mxu0 0
      %334 = vmatpush1.bf16.msra.mxu0 %v309
      %335 = vmatprep.subr.bf16.mxu0 0
      %336 = vmatpush1.bf16.msra.mxu0 %v308
      %337 = vmatprep.subr.bf16.mxu0 0
      %338 = vmatpush1.bf16.msra.mxu0 %v307
      %339 = vmatprep.subr.bf16.mxu0 0
      %340 = vmatpush2.bf16.msra.mxu0 0
      %341 = vmatprep.subr.bf16.mxu0 0
      %342 = vmatpush2.bf16.msra.mxu0 0
      %343 = vmatprep.subr.bf16.mxu0 0
      %344 = vmatpush2.bf16.msra.mxu0 0
      %345 = vmatprep.subr.bf16.mxu0 0
      %346 = vmatpush2.bf16.msra.mxu0 0
      %347 = vmatprep.subr.bf16.mxu0 0
      %348 = vmatpush2.bf16.msra.mxu0 0
      %349 = vmatprep.subr.bf16.mxu0 0
      %350 = vmatpush2.bf16.msra.mxu0 0
      %351 = vmatprep.subr.bf16.mxu0 0
      %352 = vmatpush2.bf16.msra.mxu0 0
      %353 = vmatprep.subr.bf16.mxu0 0
      %354 = vmatpush2.bf16.msra.mxu0 0
      %355 = vmatprep.mubr.bf16.mxu0 0
      %356 = vmatmul.mubr.bf16.gmra.mxu0 %v258
      %v357 = vpop.f32.mrf.mxu0
      %v358 = vadd.f32 0.0, %v357
      %v359 = vpop.f32.mrf.mxu0
      %v360 = vpop.f32.mrf.mxu0
      %v361 = vpop.f32.mrf.mxu0
      %362 = vdwg.mxu0
      %v363 = vadd.f32 %v257, %v358
      %364 = vst [vmem:[%s250] sm:$0xff] %v363
      // Predicated region
      $region37: #{positive_linear.1} parent=31 // pred_check
        %p365 = pneg %p252
      $region38: #{positive_linear.1} parent=31 // pred_check_branch
        %367 = sbr.rel (%p365) target = $region40
      $region39: #{positive_linear.1} parent=31 // pred_region
        %v368 = vld [vmem:[%s250] sm:$0xff]
        %v369 = vld [vmem:[%s243] sm:$0x1]
        %v371 = vlaneseq
        %v372 = vshrl.u32 %v371, 7
        %v373 = vsub.s32 0, %v372
        %v374 = vrot.slane %v369, %v373
        %v376 = vadd.f32 %v368, %v374
        %377 = vst [vmem:[%s250] sm:$0xff] %v376
      $region40: #{positive_linear.1} parent=31 // pred_fallthru
        _
      %p378 = scmp.lt.s32.totalorder %s19, 1
      %s379 = scalar_select %p378, %s19, 1
      %p380 = scmp.lt.s32.totalorder %s20, 0
      %s381 = scalar_select %p380, %s20, 0
      %s382 = sadd.s32 %s381, %s379
      %s383 = smul.addr %s382, 8
      %s384 = scalar_lea.vmem %s3, %s383
      // Predicated region
      $region41: #{positive_linear.1} parent=31 // pred_check
        %p385 = pneg %p135
      $region42: #{positive_linear.1} parent=31 // pred_check_branch
        %387 = sbr.rel (%p385) target = $region44
      $region43: #{positive_linear.1} parent=31 // pred_region
        _
      $region44: #{positive_linear.1} parent=31 // pred_fallthru
        _
    $region32: #{positive_linear.1} parent=5 // pred_fallthru
      _
    %p388 = scmp.le.s32.totalorder 2, %s9
    // Predicated region
    $region45: #{positive_linear.1} parent=5 // pred_check
      %p389 = pneg %p388
    $region46: #{positive_linear.1} parent=5 // pred_check_branch
      %391 = sbr.rel (%p389) target = $region48
    $region47: #{positive_linear.1} parent=5 // pred_region
      %s392 = ssub.s32 %s9, 2
      // Predicated region
      $region49: #{positive_linear.1} parent=47 // pred_check
        %p393 = pneg %p141
      $region50: #{positive_linear.1} parent=47 // pred_check_branch
        %395 = sbr.rel (%p393) target = $region52
      $region51: #{positive_linear.1} parent=47 // pred_region
        %p396 = scmp.lt.s32.totalorder %s22, 1
        %s397 = scalar_select %p396, %s22, 1
        %p398 = scmp.lt.s32.totalorder %s23, 0
        %s399 = scalar_select %p398, %s23, 0
        %s400 = sadd.s32 %s399, %s397
        %s401 = smul.addr %s400, 8
        %s402 = scalar_lea.vmem %s3, %s401
      $region52: #{positive_linear.1} parent=47 // pred_fallthru
        _
    $region48: #{positive_linear.1} parent=5 // pred_fallthru
      _
  $region6: #{positive_linear.1} parent=0 // loop_footer
    %s13 = sadd.s32 1, %s9
  $region7: #{positive_linear.1} parent=0 // loop_footer_branch
    %8 = sbr.rel target = $region3
  $region8: #{positive_linear.1} parent=0 // loop_exit
    _

</llo_original>
